<compile_context>
chip_gen: v7x
topology: tpu7x:2x2x1
jax: 0.10.0
libtpu: 0.0.40
codegen_flags: <defaults>
</compile_context>

<pallas_src>
import functools

import jax
import jax.numpy as jnp
from jax import lax
from jax.experimental import pallas as pl
from jax.experimental.pallas import tpu as pltpu
import numpy as np

_LANE = 128
_VMEM_BUDGET = 12 << 20   # conservative: fits v5e's ~16 MiB default scoped VMEM


def _round_up(x, m):
    return ((x + m - 1) // m) * m


def _cdiv(a, b):
    return -(-a // b)


def _dot_f32(a, b, precision):
    # Fast MXU path by default; HIGHEST (multi-pass f32-exact) only if asked.
    if precision is None:
        return jnp.dot(a, b, preferred_element_type=jnp.float32)
    return jnp.dot(a, b, preferred_element_type=jnp.float32, precision=precision)


def _sine_kernel(x_ref, w_ref, b_ref, o_ref, *, omega_0, precision):
    """Untiled-K kernel: MXU matmul + fused bias/omega/sin epilogue."""
    z = _dot_f32(x_ref[...], w_ref[...], precision)      # (tm, out) f32
    b = b_ref[...].astype(jnp.float32)                   # (1, out) single read
    o_ref[...] = jnp.sin(omega_0 * (z + b)).astype(o_ref.dtype)


def _sine_kernel_ktiled(x_ref, w_ref, b_ref, o_ref, acc_ref, *, omega_0,
                        precision):
    """K-tiled kernel: accumulate partial products, finalize with bias/sin."""
    k = pl.program_id(1)

    @pl.when(k == 0)
    def _():
        acc_ref[...] = jnp.zeros_like(acc_ref)

    acc_ref[...] += _dot_f32(x_ref[...], w_ref[...], precision)

    @pl.when(k == pl.num_programs(1) - 1)
    def _():
        b = b_ref[...].astype(jnp.float32)
        o_ref[...] = jnp.sin(omega_0 * (acc_ref[...] + b)).astype(o_ref.dtype)


def _choose_tile_rows(batch, tile_k, out_p, x_isz, o_isz, acc_isz, w_isz,
                      align, vmem_budget=_VMEM_BUDGET, max_rows=1024,
                      min_grid_steps=4):
    """Largest row tile that fits the VMEM budget, with >= min_grid_steps
    grid steps (keeps DMA pipelining + both v7x TensorCores busy)."""
    # "Resident" weight/bias (constant index_map) still get a hidden second
    # pipeline buffer -> count them twice.
    fixed = 2 * (tile_k * out_p + out_p) * w_isz
    per_row = (2 * tile_k * x_isz         # x tile, double-buffered
               + 2 * out_p * o_isz        # out tile, double-buffered
               + out_p * acc_isz)         # f32 accumulator (K-tiled only)
    tm = max((vmem_budget - fixed) // max(per_row, 1), align)
    tm = min(tm, max_rows)
    if batch > align * min_grid_steps:
        tm = min(tm, _round_up(_cdiv(batch, min_grid_steps), align))
    tm = max(align, (tm // align) * align)
    tm = min(tm, _round_up(batch, align))
    return int(tm)


def sine_layer(x, weight_t, bias, omega_0=30.0, *, tile_rows=None, tile_k=None,
               precision=None, out_dtype=None):
    """Pallas TPU implementation of SineLayer.forward.

    x:        (B, in_features)
    weight_t: (in_features, out_features) -- the PyTorch weight stored
              pre-transposed ONCE at init (no per-call HBM transpose).
    bias:     (out_features,)
    precision: None for the fast MXU path, lax.Precision.HIGHEST for
               f32-exact parity.
    Returns (B, out_features) in out_dtype (defaults to x.dtype).
    """
    B, in_features = x.shape
    in_f2, out_features = weight_t.shape
    assert in_f2 == in_features, "weight_t must be (in_features, out_features)"
    out_dtype = jnp.dtype(out_dtype or x.dtype)

    # Keep the output lane-dense: pad out_features up to a multiple of 128 so
    # the kernel issues full (unmasked) vector stores; slice the pad off after.
    out_p = _round_up(out_features, _LANE)
    if out_p != out_features:
        weight_t = jnp.pad(weight_t, ((0, 0), (0, out_p - out_features)))
        bias = jnp.pad(bias, (0, out_p - out_features))
    b2d = bias.reshape(1, out_p)

    x_isz = x.dtype.itemsize
    w_isz = weight_t.dtype.itemsize
    o_isz = out_dtype.itemsize
    row_align = max(8, 32 // max(x_isz, 1))   # 8 for f32, 16 for bf16

    # Tile the contraction (K) axis only if the (double-buffered) resident
    # weight would swamp the VMEM budget (wide layers, v7x's 64 MiB VMEM).
    if tile_k is None:
        tile_k = in_features
        if 2 * (in_features * out_p + out_p) * w_isz > _VMEM_BUDGET // 2:
            for cand in (1024, 512, 256, 128):
                if in_features % cand == 0:
                    tile_k = cand
                    break
            # TODO(synk): if in_features has no multiple-of-128 divisor and the
            # full weight still does not fit VMEM, a padded-K path is needed.
    k_tiled = tile_k < in_features
    if k_tiled:
        assert in_features % tile_k == 0, "tile_k must divide in_features"

    tm = tile_rows or _choose_tile_rows(
        B, tile_k, out_p, x_isz, o_isz, 4 if k_tiled else 0, w_isz, row_align)
    nb = _cdiv(B, tm)   # ragged last block handled by Pallas; no jnp.pad of x

    omega_0 = float(omega_0)

    cost = pl.CostEstimate(
        flops=2 * B * in_features * out_p,
        transcendentals=B * out_p,
        bytes_accessed=(B * in_features * x_isz
                        + (in_features * out_p + out_p) * w_isz
                        + B * out_p * o_isz),
    )

    # Explicit scoped-VMEM limit from the actual buffers (+ headroom), capped
    # at v7x's 64 MiB physical VMEM.
    vmem_need = (2 * tm * tile_k * x_isz + 2 * tm * out_p * o_isz
                 + 2 * (tile_k * out_p + out_p) * w_isz
                 + (tm * out_p * 4 if k_tiled else 0))
    vmem_limit = int(min(max(vmem_need + (4 << 20), 16 << 20), 64 << 20))

    if not k_tiled:
        kernel = functools.partial(_sine_kernel, omega_0=omega_0,
                                   precision=precision)
        grid = (nb,)
        in_specs = [
            pl.BlockSpec((tm, in_features), lambda i: (i, 0)),
            # Weight / bias: same block every step -> stay VMEM-resident.
            pl.BlockSpec((in_features, out_p), lambda i: (0, 0)),
            pl.BlockSpec((1, out_p), lambda i: (0, 0)),
        ]
        out_specs = pl.BlockSpec((tm, out_p), lambda i: (i, 0))
        scratch_shapes = ()
        dims = ("parallel",)
    else:
        kernel = functools.partial(_sine_kernel_ktiled, omega_0=omega_0,
                                   precision=precision)
        grid = (nb, in_features // tile_k)
        in_specs = [
            pl.BlockSpec((tm, tile_k), lambda i, k: (i, k)),
            pl.BlockSpec((tile_k, out_p), lambda i, k: (k, 0)),
            pl.BlockSpec((1, out_p), lambda i, k: (0, 0)),
        ]
        out_specs = pl.BlockSpec((tm, out_p), lambda i, k: (i, 0))
        scratch_shapes = (pltpu.VMEM((tm, out_p), jnp.float32),)
        dims = ("parallel", "arbitrary")

    out = pl.pallas_call(
        kernel,
        out_shape=jax.ShapeDtypeStruct((B, out_p), out_dtype),
        grid=grid,
        in_specs=in_specs,
        out_specs=out_specs,
        scratch_shapes=scratch_shapes,
        compiler_params=pltpu.CompilerParams(
            dimension_semantics=dims,
            vmem_limit_bytes=vmem_limit),
        cost_estimate=cost,
    )(x, weight_t, b2d)

    return out if out_p == out_features else out[:, :out_features]


def init_sine_layer_params(key, in_features, out_features, is_first=False,
                           omega_0=30.0, dtype=jnp.float32):
    """SIREN init matching SineLayer.init_weights, but the weight is returned
    already transposed to (in_features, out_features) so the forward pass
    never pays a per-call HBM transpose."""
    kw, kb = jax.random.split(key)
    if is_first:
        bound = 1.0 / in_features
    else:
        bound = float(np.sqrt(6.0 / in_features) / omega_0)
    weight_t = jax.random.uniform(kw, (in_features, out_features), dtype,
                                  -bound, bound)
    # nn.Linear default bias init: U(-1/sqrt(in), 1/sqrt(in))
    b_bound = 1.0 / float(np.sqrt(in_features))
    bias = jax.random.uniform(kb, (out_features,), dtype, -b_bound, b_bound)
    return weight_t, bias


def _reference(x, weight_t, bias, omega_0):
    z = jnp.dot(x, weight_t, preferred_element_type=jnp.float32,
                precision=lax.Precision.HIGHEST) + bias
    return jnp.sin(omega_0 * z)


if __name__ == "__main__":
    key = jax.random.PRNGKey(0)
    omega_0 = 30.0
    k1, k2, k3, kx1, kx2, kx3 = jax.random.split(key, 6)

    # 1) Default path: resident weight, untiled K, ragged batch (grid of 4,
    #    partial last block), fast-MXU default precision.
    b1, i1, o1 = 200, 64, 128
    x1 = jax.random.normal(kx1, (b1, i1), jnp.float32)
    w1, bia1 = init_sine_layer_params(k1, i1, o1, is_first=True,
                                      omega_0=omega_0)
    y1 = jax.block_until_ready(sine_layer(x1, w1, bia1, omega_0))
    assert y1.shape == (b1, o1)
    # Loose tolerance: default precision may use bf16 MXU passes.
    np.testing.assert_allclose(np.asarray(y1),
                               np.asarray(_reference(x1, w1, bia1, omega_0)),
                               rtol=3e-2, atol=3e-2)

    # 2) K-tiled fallback path (forced tile_k): grid (4, 2) with an f32 VMEM
    #    accumulator, init/finalize via pl.when.
    b2, i2, o2 = 64, 256, 128
    x2 = jax.random.normal(kx2, (b2, i2), jnp.float32)
    w2, bia2 = init_sine_layer_params(k2, i2, o2, is_first=False,
                                      omega_0=omega_0)
    y2 = jax.block_until_ready(sine_layer(x2, w2, bia2, omega_0, tile_k=128))
    assert y2.shape == (b2, o2)
    np.testing.assert_allclose(np.asarray(y2),
                               np.asarray(_reference(x2, w2, bia2, omega_0)),
                               rtol=3e-2, atol=3e-2)

    # 3) Narrow output (final-layer style, out=3): lane-padded output path,
    #    HIGHEST precision opt-in checked against the f32 reference tightly.
    b3, i3, o3 = 40, 64, 3
    x3 = jax.random.normal(kx3, (b3, i3), jnp.float32)
    w3, bia3 = init_sine_layer_params(k3, i3, o3, is_first=False,
                                      omega_0=omega_0)
    y3 = jax.block_until_ready(
        sine_layer(x3, w3, bia3, omega_0, precision=lax.Precision.HIGHEST))
    assert y3.shape == (b3, o3)
    np.testing.assert_allclose(np.asarray(y3),
                               np.asarray(_reference(x3, w3, bia3, omega_0)),
                               rtol=1e-4, atol=1e-4)

    print("KERNEL_OK")
</pallas_src>

<mosaic_0001>
module attributes {stable_mosaic.version = 11 : i64} {
  func.func @_sine_kernel(%arg0: i32, %arg1: memref<56x64xf32, #tpu.memory_space<vmem>>, %arg2: memref<64x128xf32, #tpu.memory_space<vmem>>, %arg3: memref<1x128xf32, #tpu.memory_space<vmem>>, %arg4: memref<56x128xf32, #tpu.memory_space<vmem>>) attributes {dimension_semantics = [#tpu.dimension_semantics<parallel>], iteration_bounds = array<i64: 4>, scalar_prefetch = 0 : i64, scratch_operands = 0 : i64, tpu.core_type = #tpu.core_type<tc>, window_params = [{transform_indices = @transform_0, window_bounds = array<i64: 56, 64>}, {pipeline_mode = #tpu.pipeline_mode<synchronous>, transform_indices = @transform_1, window_bounds = array<i64: 64, 128>}, {pipeline_mode = #tpu.pipeline_mode<synchronous>, transform_indices = @transform_2, window_bounds = array<i64: 1, 128>}, {transform_indices = @transform_3, window_bounds = array<i64: 56, 128>}]} {
    %c0 = arith.constant 0 : index
    %c0_0 = arith.constant 0 : index
    %0 = vector.load %arg1[%c0, %c0_0] : memref<56x64xf32, #tpu.memory_space<vmem>>, vector<56x64xf32>
    %c0_1 = arith.constant 0 : index
    %c0_2 = arith.constant 0 : index
    %1 = vector.load %arg2[%c0_1, %c0_2] : memref<64x128xf32, #tpu.memory_space<vmem>>, vector<64x128xf32>
    %cst = arith.constant dense<0.000000e+00> : vector<56x128xf32>
    %2 = tpu.matmul %0, %1, %cst {dimension_numbers = #tpu.dot_dimension_numbers<[1], [0], [0], [1], [0, 0, 1, 1], [], []>} : vector<56x64xf32>, vector<64x128xf32>, vector<56x128xf32> -> vector<56x128xf32>
    %c0_3 = arith.constant 0 : index
    %c0_4 = arith.constant 0 : index
    %3 = vector.load %arg3[%c0_3, %c0_4] : memref<1x128xf32, #tpu.memory_space<vmem>>, vector<1x128xf32>
    %4 = vector.broadcast %3 : vector<1x128xf32> to vector<56x128xf32>
    %5 = arith.addf %2, %4 : vector<56x128xf32>
    %cst_5 = arith.constant 3.000000e+01 : f32
    %6 = vector.broadcast %cst_5 : f32 to vector<56x128xf32>
    %7 = arith.mulf %6, %5 : vector<56x128xf32>
    %8 = math.sin %7 : vector<56x128xf32>
    %c0_6 = arith.constant 0 : index
    %c0_7 = arith.constant 0 : index
    %9 = vector.load %arg4[%c0_6, %c0_7] : memref<56x128xf32, #tpu.memory_space<vmem>>, vector<56x128xf32>
    tpu.vector_store %arg4[%c0_6, %c0_7], %8 {strides = array<i32>} : memref<56x128xf32, #tpu.memory_space<vmem>>, vector<56x128xf32>,
    return
  }
  func.func @transform_0(%arg0: i32) -> (i32, i32) {
    %c0_i32 = arith.constant 0 : i32
    %c0_i32_0 = arith.constant 0 : i32
    return %arg0, %c0_i32 : i32, i32
  }
  func.func @transform_1(%arg0: i32) -> (i32, i32) {
    %c0_i32 = arith.constant 0 : i32
    %c0_i32_0 = arith.constant 0 : i32
    %c0_i32_1 = arith.constant 0 : i32
    return %c0_i32, %c0_i32_0 : i32, i32
  }
  func.func @transform_2(%arg0: i32) -> (i32, i32) {
    %c0_i32 = arith.constant 0 : i32
    %c0_i32_0 = arith.constant 0 : i32
    %c0_i32_1 = arith.constant 0 : i32
    return %c0_i32, %c0_i32_0 : i32, i32
  }
  func.func @transform_3(%arg0: i32) -> (i32, i32) {
    %c0_i32 = arith.constant 0 : i32
    %c0_i32_0 = arith.constant 0 : i32
    return %arg0, %c0_i32 : i32, i32
  }
}

</mosaic_0001>

<llo_original>
// kernel: tpu_custom_call.1
$region0: #{tpu_custom_call.1}
  #allocation0 [shape = 'u32[]', space=smem, size = 0x4, offset = 0x4, fixed_abs, tag = 'smem constant byte address 0x4 - core index']
  #allocation1 [shape = 'u32[144,128]{1,0:T(1,128)}', space=vmem, size = 0x12000, scoped, tag = 'internal scratch']
  %s0 = inlined_call_operand.vmem [shape: f32[200,64], index: 0, kind: input, shape index: {}]
  %s1 = inlined_call_operand.vmem [shape: f32[64,128], index: 1, kind: input, shape index: {}]
  %s2 = inlined_call_operand.vmem [shape: f32[1,128], index: 2, kind: input, shape index: {}]
  %s3 = inlined_call_operand.hbm [shape: f32[200,128], index: 3, kind: output, shape index: {}]
  %s4 = sld [smem:[#allocation0]]
  $region45: #{tpu_custom_call.1} parent=0
    _
  %s6 = ssub.s32 1, %s4
  %s7 = scalar_select 0, %s6, %s4
  $region1: #{tpu_custom_call.1} parent=0
    #allocation2 [shape = 'u8[57344]{0}', space=vmem, size = 0xe000, scoped, tag = 'output window, operand 0']
    #allocation3 [shape = 's32[2]{0}', space=sflag, size = 0x8, scoped, tag = 'scoped memory for tpu_custom_call.1']
    %8 = vsyncpa [#allocation3], 0
    %s9 = scalar_lea.sflag [#allocation3], 1
    %10 = vsyncpa %s9, 0
    loop: start=0, step=1, limit=6
    $region2: #{tpu_custom_call.1} parent=1 // loop_pre_header
      _
    $region3: #{tpu_custom_call.1} parent=1 // loop_header
      %s12 = sphi 0, %s16
      %p13 = scmp.ge.s32.totalorder %s12, 6
      %s22 = sphi 0, %s24
      %s25 = sphi 0, %s22
      %s26 = sphi 0, %s25
      %s42 = sphi 0, %s26
      %s46 = sphi 0, %s46
      %s48 = sphi 0, %s46
      %s49 = sphi 0, %s48
      %s63 = sphi 0, %s49
      %s67 = sphi 0, %s67
      %s69 = sphi 0, %s67
      %s70 = sphi 0, %s69
      %s84 = sphi 0, %s70
      %s90 = sphi 0, %s92
      %s93 = sphi 0, %s90
      %s94 = sphi 0, %s93
      %s110 = sphi 0, %s94
    $region4: #{tpu_custom_call.1} parent=1 // loop_header_branch
      %15 = sbr.rel (%p13) target = $region8
    $region5: #{tpu_custom_call.1} parent=1 // loop_body
      %s17 = ssub.s32 %s12, 1
      %s18 = ssub.s32 %s12, 2
      %s19 = sadd.s32 %s12, 1
      %s20 = ssub.s32 %s12, %s19
      %p21 = scmp.eq.s32.totalorder %s20, 0
      %s23 = sadd.s32 %s22, 1
      %s24 = scalar_select %p21, %s22, %s23
      %p27 = pneg %p21
      %p28 = scmp.eq.s32.totalorder %s12, 3
      %p29 = por %p27, %p28
      %p30 = scmp.ne.s32.totalorder %s22, %s25
      %p31 = scmp.eq.s32.totalorder %s12, 0
      %p32 = por %p30, %p31
      %p33 = scmp.ne.s32.totalorder %s22, %s25
      %p34 = scmp.eq.s32.totalorder %s17, 3
      %p35 = por %p33, %p34
      %p36 = scmp.ne.s32.totalorder %s25, %s26
      %p37 = scmp.eq.s32.totalorder %s17, 0
      %p38 = por %p36, %p37
      %p39 = scmp.ne.s32.totalorder %s25, %s26
      %p40 = scmp.eq.s32.totalorder %s18, 3
      %p41 = por %p39, %p40
      %p43 = scmp.ne.s32.totalorder %s26, %s42
      %p44 = scmp.eq.s32.totalorder %s18, 0
      %p45 = por %p43, %p44
      %s47 = sadd.s32 %s46, 1
      %p50 = scmp.eq.s32.totalorder %s12, 3
      %p51 = scmp.ne.s32.totalorder %s46, %s48
      %p52 = scmp.eq.s32.totalorder %s12, 0
      %p53 = por %p51, %p52
      %p54 = scmp.ne.s32.totalorder %s46, %s48
      %p55 = scmp.eq.s32.totalorder %s17, 3
      %p56 = por %p54, %p55
      %p57 = scmp.ne.s32.totalorder %s48, %s49
      %p58 = scmp.eq.s32.totalorder %s17, 0
      %p59 = por %p57, %p58
      %p60 = scmp.ne.s32.totalorder %s48, %s49
      %p61 = scmp.eq.s32.totalorder %s18, 3
      %p62 = por %p60, %p61
      %p64 = scmp.ne.s32.totalorder %s49, %s63
      %p65 = scmp.eq.s32.totalorder %s18, 0
      %p66 = por %p64, %p65
      %s68 = sadd.s32 %s67, 1
      %p71 = scmp.eq.s32.totalorder %s12, 3
      %p72 = scmp.ne.s32.totalorder %s67, %s69
      %p73 = scmp.eq.s32.totalorder %s12, 0
      %p74 = por %p72, %p73
      %p75 = scmp.ne.s32.totalorder %s67, %s69
      %p76 = scmp.eq.s32.totalorder %s17, 3
      %p77 = por %p75, %p76
      %p78 = scmp.ne.s32.totalorder %s69, %s70
      %p79 = scmp.eq.s32.totalorder %s17, 0
      %p80 = por %p78, %p79
      %p81 = scmp.ne.s32.totalorder %s69, %s70
      %p82 = scmp.eq.s32.totalorder %s18, 3
      %p83 = por %p81, %p82
      %p85 = scmp.ne.s32.totalorder %s70, %s84
      %p86 = scmp.eq.s32.totalorder %s18, 0
      %p87 = por %p85, %p86
      %s88 = ssub.s32 %s12, %s19
      %p89 = scmp.eq.s32.totalorder %s88, 0
      %s91 = sadd.s32 %s90, 1
      %s92 = scalar_select %p89, %s90, %s91
      %p95 = pneg %p89
      %p96 = scmp.eq.s32.totalorder %s12, 3
      %p97 = por %p95, %p96
      %p98 = scmp.ne.s32.totalorder %s90, %s93
      %p99 = scmp.eq.s32.totalorder %s12, 0
      %p100 = por %p98, %p99
      %p101 = scmp.ne.s32.totalorder %s90, %s93
      %p102 = scmp.eq.s32.totalorder %s17, 3
      %p103 = por %p101, %p102
      %p104 = scmp.ne.s32.totalorder %s93, %s94
      %p105 = scmp.eq.s32.totalorder %s17, 0
      %p106 = por %p104, %p105
      %p107 = scmp.ne.s32.totalorder %s93, %s94
      %p108 = scmp.eq.s32.totalorder %s18, 3
      %p109 = por %p107, %p108
      %p111 = scmp.ne.s32.totalorder %s94, %s110
      %p112 = scmp.eq.s32.totalorder %s18, 0
      %p113 = por %p111, %p112
      %p114 = scmp.le.s32.totalorder 1, %s12
      %p115 = scmp.lt.s32.totalorder %s12, 5
      %p116 = pnand %p114, %p115
      %p117 = pneg %p116
      // Predicated region
      $region9: #{tpu_custom_call.1} parent=5 // pred_check
        _
      $region10: #{tpu_custom_call.1} parent=5 // pred_check_branch
        %119 = sbr.rel (%p116) target = $region12
      $region11: #{tpu_custom_call.1} parent=5 // pred_region
        %s120 = ssub.s32 %s12, 1
        // Predicated region
        $region13: #{tpu_custom_call.1} parent=11 // pred_check
          %p121 = pneg %p59
        $region14: #{tpu_custom_call.1} parent=11 // pred_check_branch
          %123 = sbr.rel (%p121) target = $region16
        $region15: #{tpu_custom_call.1} parent=11 // pred_region
          _
        $region16: #{tpu_custom_call.1} parent=11 // pred_fallthru
          _
        // Predicated region
        $region17: #{tpu_custom_call.1} parent=11 // pred_check
          %p124 = pneg %p80
        $region18: #{tpu_custom_call.1} parent=11 // pred_check_branch
          %126 = sbr.rel (%p124) target = $region20
        $region19: #{tpu_custom_call.1} parent=11 // pred_region
          _
        $region20: #{tpu_custom_call.1} parent=11 // pred_fallthru
          _
      $region12: #{tpu_custom_call.1} parent=5 // pred_fallthru
        _
      %p127 = scmp.lt.s32.totalorder %s12, 4
      // Predicated region
      $region21: #{tpu_custom_call.1} parent=5 // pred_check
        %p128 = pneg %p127
      $region22: #{tpu_custom_call.1} parent=5 // pred_check_branch
        %130 = sbr.rel (%p128) target = $region24
      $region23: #{tpu_custom_call.1} parent=5 // pred_region
        // Predicated region
        $region25: #{tpu_custom_call.1} parent=23 // pred_check
          %p131 = pneg %p32
        $region26: #{tpu_custom_call.1} parent=23 // pred_check_branch
          %133 = sbr.rel (%p131) target = $region28
        $region27: #{tpu_custom_call.1} parent=23 // pred_region
          %s134 = smul.u32 7, %s12
          %s135 = ssub.s32 25, %s134
          %p136 = scmp.lt.s32.totalorder %s135, 7
          %s137 = scalar_select %p136, %s135, 7
          %s138 = smul.u32 128, %s137
          %p139 = scmp.lt.s32.totalorder %s134, 24
          %s140 = scalar_select %p139, %s134, 24
          %s141 = smul.addr %s140, 8
          %s142 = scalar_lea.vmem %s0, %s141
          %s143 = smul.u32 7, %s12
          %s144 = ssub.s32 25, %s143
          %p145 = scmp.lt.s32.totalorder %s144, 7
          %s146 = scalar_select %p145, %s144, 7
          %s147 = smul.u32 128, %s146
        $region28: #{tpu_custom_call.1} parent=23 // pred_fallthru
          _
      $region24: #{tpu_custom_call.1} parent=5 // pred_fallthru
        _
      %p148 = scmp.le.s32.totalorder 1, %s12
      %p149 = scmp.lt.s32.totalorder %s12, 5
      %p150 = pnand %p148, %p149
      %p151 = pneg %p150
      // Predicated region
      $region29: #{tpu_custom_call.1} parent=5 // pred_check
        _
      $region30: #{tpu_custom_call.1} parent=5 // pred_check_branch
        %153 = sbr.rel (%p150) target = $region32
      $region31: #{tpu_custom_call.1} parent=5 // pred_region
        %s154 = ssub.s32 %s12, 1
        %s155 = smul.u32 7, %s17
        %s156 = ssub.s32 25, %s155
        %p157 = scmp.lt.s32.totalorder %s156, 7
        %s158 = scalar_select %p157, %s156, 7
        %s159 = smul.u32 128, %s158
        %p160 = scmp.lt.s32.totalorder %s155, 24
        %s161 = scalar_select %p160, %s155, 24
        %s162 = smul.addr %s161, 8
        %s163 = scalar_lea.vmem %s0, %s162
        %p164 = pneg %p38
        %p165 = pneg %p35
        %p166 = pneg %p59
        %p167 = pneg %p56
        %p168 = pneg %p80
        %p169 = pneg %p77
        %p170 = pneg %p106
        %p171 = pneg %p103
        %s172 = sand.u32 %s93, 1
        %s173 = scalar_lea.sflag [#allocation3], %s172
        %s174 = sand.u32 %s93, 1
        %s175 = smul.addr %s174, 56
        %s176 = scalar_lea.vmem [#allocation2], %s175
        %s177 = smul.u32 7, %s17
        %s178 = ssub.s32 25, %s177
        %p179 = scmp.lt.s32.totalorder %s178, 7
        %s180 = scalar_select %p179, %s178, 7
        %s181 = smul.u32 128, %s180
        %p182 = scmp.lt.s32.totalorder %s177, 24
        %s183 = scalar_select %p182, %s177, 24
        %s184 = smul.addr %s183, 8
        %s185 = scalar_lea.vmem %s0, %s184
        %s186 = smul.u32 7, %s17
        %s187 = ssub.s32 25, %s186
        %p188 = scmp.lt.s32.totalorder %s187, 7
        %s189 = scalar_select %p188, %s187, 7
        %s190 = smul.u32 128, %s189
        %s191 = smul.u32 7, %s17
        %s192 = ssub.s32 25, %s191
        %p193 = scmp.lt.s32.totalorder %s192, 7
        %s194 = scalar_select %p193, %s192, 7
        %s195 = smul.u32 128, %s194
        %v196 = vld [vmem:[%s185] sm:$0xff]
        %v197 = vld [vmem:[%s185 + $0x8] sm:$0xff]
        %v198 = vld [vmem:[%s185 + $0x10] sm:$0xff]
        %v199 = vld [vmem:[%s185 + $0x18] sm:$0xff]
        %v200 = vld [vmem:[%s185 + $0x20] sm:$0xff]
        %v201 = vld [vmem:[%s185 + $0x28] sm:$0xff]
        %v202 = vld [vmem:[%s185 + $0x30] sm:$0xff]
        %v203 = vld [vmem:[%s1] sm:$0xff]
        %v204 = vld [vmem:[%s1 + $0x8] sm:$0xff]
        %v205 = vld [vmem:[%s1 + $0x10] sm:$0xff]
        %v206 = vld [vmem:[%s1 + $0x18] sm:$0xff]
        %v207 = vld [vmem:[%s1 + $0x20] sm:$0xff]
        %v208 = vld [vmem:[%s1 + $0x28] sm:$0xff]
        %v209 = vld [vmem:[%s1 + $0x30] sm:$0xff]
        %v210 = vld [vmem:[%s1 + $0x38] sm:$0xff]
        %v211 = vld [vmem:[%s2] sm:$0x1]
        %v213 = vlaneseq
        %v214 = vshrl.u32 %v213, 7
        %v215 = vsub.s32 0, %v214
        %v216 = vrot.slane %v211, %v215
        %vm218 = vcmask 523264
        %v220 = vsel %vm218, %v196, 0
        %v223 = vsel %vm218, %v197, 0
        %v226 = vsel %vm218, %v198, 0
        %v229 = vsel %vm218, %v199, 0
        %v232 = vsel %vm218, %v200, 0
        %v235 = vsel %vm218, %v201, 0
        %v238 = vsel %vm218, %v202, 0
        %240 = vmatprep.subr.mxu0 0.0
        %241 = vmatpush1.msra.mxu0 %v203
        %242 = vmatprep.subr.mxu0 0.0
        %243 = vmatpush1.msra.mxu0 %v204
        %244 = vmatprep.subr.mxu0 0.0
        %245 = vmatpush1.msra.mxu0 %v205
        %246 = vmatprep.subr.mxu0 0.0
        %247 = vmatpush1.msra.mxu0 %v206
        %248 = vmatprep.subr.mxu0 0.0
        %249 = vmatpush1.msra.mxu0 %v207
        %250 = vmatprep.subr.mxu0 0.0
        %251 = vmatpush1.msra.mxu0 %v208
        %252 = vmatprep.subr.mxu0 0.0
        %253 = vmatpush1.msra.mxu0 %v209
        %254 = vmatprep.subr.mxu0 0.0
        %255 = vmatpush1.msra.mxu0 %v210
        %256 = vmatprep.subr.mxu0 0.0
        %257 = vmatpush1.msra.mxu0 0.0
        %258 = vmatprep.subr.mxu0 0.0
        %259 = vmatpush1.msra.mxu0 0.0
        %260 = vmatprep.subr.mxu0 0.0
        %261 = vmatpush1.msra.mxu0 0.0
        %262 = vmatprep.subr.mxu0 0.0
        %263 = vmatpush1.msra.mxu0 0.0
        %264 = vmatprep.subr.mxu0 0.0
        %265 = vmatpush1.msra.mxu0 0.0
        %266 = vmatprep.subr.mxu0 0.0
        %267 = vmatpush1.msra.mxu0 0.0
        %268 = vmatprep.subr.mxu0 0.0
        %269 = vmatpush1.msra.mxu0 0.0
        %270 = vmatprep.subr.mxu0 0.0
        %271 = vmatpush1.msra.mxu0 0.0
        %272 = vmatprep.subr.mxu0 0.0
        %273 = vmatpush1.msra.mxu0 0.0
        %274 = vmatprep.subr.mxu0 0.0
        %275 = vmatpush1.msra.mxu0 0.0
        %276 = vmatprep.subr.mxu0 0.0
        %277 = vmatpush1.msra.mxu0 0.0
        %278 = vmatprep.subr.mxu0 0.0
        %279 = vmatpush1.msra.mxu0 0.0
        %280 = vmatprep.subr.mxu0 0.0
        %281 = vmatpush1.msra.mxu0 0.0
        %282 = vmatprep.subr.mxu0 0.0
        %283 = vmatpush1.msra.mxu0 0.0
        %284 = vmatprep.subr.mxu0 0.0
        %285 = vmatpush1.msra.mxu0 0.0
        %286 = vmatprep.subr.mxu0 0.0
        %287 = vmatpush1.msra.mxu0 0.0
        %288 = vmatprep.subr.mxu0 0.0
        %289 = vmatpush1.msra.mxu0 0.0
        %290 = vmatprep.subr.mxu0 0.0
        %291 = vmatpush1.msra.mxu0 0.0
        %292 = vmatprep.subr.mxu0 0.0
        %293 = vmatpush1.msra.mxu0 0.0
        %294 = vmatprep.subr.mxu0 0.0
        %295 = vmatpush1.msra.mxu0 0.0
        %296 = vmatprep.subr.mxu0 0.0
        %297 = vmatpush1.msra.mxu0 0.0
        %298 = vmatprep.subr.mxu0 0.0
        %299 = vmatpush1.msra.mxu0 0.0
        %300 = vmatprep.subr.mxu0 0.0
        %301 = vmatpush1.msra.mxu0 0.0
        %302 = vmatprep.subr.mxu0 0.0
        %303 = vmatpush1.msra.mxu0 0.0
        %304 = vmatprep.mubr.f32.mxu0 0.0
        %305 = vmatmul.mubr.f32.gmra.mrb[0].mxu0 %v220
        %v306 = vpop.f32.mrb[0].mxu0
        %v307 = vadd.f32 %v216, %v306
        %v308 = vpop.f32.mrb[0].mxu0
        %309 = vmatprep.mubr.f32.mxu0 0.0
        %310 = vmatmul.mubr.f32.gmra.mrb[0].mxu0 %v223
        %v311 = vpop.f32.mrb[0].mxu0
        %v312 = vadd.f32 %v216, %v311
        %v313 = vpop.f32.mrb[0].mxu0
        %314 = vmatprep.mubr.f32.mxu0 0.0
        %315 = vmatmul.mubr.f32.gmra.mrb[0].mxu0 %v226
        %v316 = vpop.f32.mrb[0].mxu0
        %v317 = vadd.f32 %v216, %v316
        %v318 = vpop.f32.mrb[0].mxu0
        %319 = vmatprep.mubr.f32.mxu0 0.0
        %320 = vmatmul.mubr.f32.gmra.mrb[0].mxu0 %v229
        %v321 = vpop.f32.mrb[0].mxu0
        %v322 = vadd.f32 %v216, %v321
        %v323 = vpop.f32.mrb[0].mxu0
        %324 = vmatprep.mubr.f32.mxu0 0.0
        %325 = vmatmul.mubr.f32.gmra.mrb[0].mxu0 %v232
        %v326 = vpop.f32.mrb[0].mxu0
        %v327 = vadd.f32 %v216, %v326
        %v328 = vpop.f32.mrb[0].mxu0
        %329 = vmatprep.mubr.f32.mxu0 0.0
        %330 = vmatmul.mubr.f32.gmra.mrb[0].mxu0 %v235
        %v331 = vpop.f32.mrb[0].mxu0
        %v332 = vadd.f32 %v216, %v331
        %v333 = vpop.f32.mrb[0].mxu0
        %334 = vmatprep.mubr.f32.mxu0 0.0
        %335 = vmatmul.mubr.f32.gmra.mrb[0].mxu0 %v238
        %v336 = vpop.f32.mrb[0].mxu0
        %v337 = vadd.f32 %v216, %v336
        %v338 = vpop.f32.mrb[0].mxu0
        %339 = vdwg.mxu0
        %v340 = vmul.f32 %v307, 30.0
        %v341 = vmul.f32 %v312, 30.0
        %v342 = vmul.f32 %v317, 30.0
        %v343 = vmul.f32 %v322, 30.0
        %v344 = vmul.f32 %v327, 30.0
        %v345 = vmul.f32 %v332, 30.0
        %v346 = vmul.f32 %v337, 30.0
        %v347 = vand.u32 2147483647, %v340
        %vm348 = vcmp.le.f32.partialorder %v347, 0.7853982
        %vm349 = vcmp.lt.s32.totalorder %v340, 0
        %v350 = vand.u32 %v340, 2139095040
        %v351 = vshrl.u32 %v350, 23
        %v352 = vsub.s32 %v351, 127
        %v353 = vand.u32 2147483647, %v340
        %v354 = vand.u32 %v353, 8388607
        %v355 = vor.u32 %v354, 8388608
        %v356 = vsub.s32 0, %v355
        %v357 = vadd.s32 %v352, 1
        %vm358 = vcmp.gt.s32.totalorder %v357, 0
        %v359 = vsel %vm358, %v357, 0
        %v360 = vshrl.u32 %v359, 5
        %v361 = vand.u32 %v359, 31
        %v362 = vsub.s32 32, %v361
        %v363 = vshrl.u32 683565275, %v362
        %v364 = vshll.u32 683565275, %v361
        %v365 = vshrl.u32 2475754826, %v362
        %v366 = vor.u32 %v364, %v365
        %v367 = vshll.u32 2475754826, %v361
        %v368 = vshrl.u32 2131351028, %v362
        %v369 = vor.u32 %v367, %v368
        %v370 = vshll.u32 2131351028, %v361
        %v371 = vshrl.u32 2102212464, %v362
        %v372 = vor.u32 %v370, %v371
        %v373 = vshll.u32 2102212464, %v361
        %v374 = vshrl.u32 920167782, %v362
        %v375 = vor.u32 %v373, %v374
        %v376 = vshll.u32 920167782, %v361
        %v377 = vshrl.u32 1326507024, %v362
        %v378 = vor.u32 %v376, %v377
        %vm379 = vcmp.lt.s32.totalorder %v360, 1
        %vm380 = vcmp.lt.s32.totalorder %v360, 2
        %vm381 = vcmp.lt.s32.totalorder %v360, 3
        %vm382 = vcmp.lt.s32.totalorder %v360, 4
        %v383 = vsel %vm379, %v363, %v366
        %v384 = vsel %vm382, %v372, 2102212464
        %v385 = vsel %vm381, %v369, %v384
        %v386 = vsel %vm380, %v383, %v385
        %v387 = vsel %vm379, %v366, %v369
        %v388 = vsel %vm382, %v375, 920167782
        %v389 = vsel %vm381, %v372, %v388
        %v390 = vsel %vm380, %v387, %v389
        %v391 = vsel %vm379, %v369, %v372
        %v392 = vsel %vm382, %v378, 1326507024
        %v393 = vsel %vm381, %v375, %v392
        %v394 = vsel %vm380, %v391, %v393
        %v395 = vshll.u32 %v355, 8
        %v396 = vmul.u32.u64.compose %v395, %v394
        %v397 = vextract.low.u32 %v396
        %v398 = vextract.high.u32 %v396
        %v399 = vmul.u32.u64.compose %v395, %v390
        %v400 = vextract.low.u32 %v399
        %v401 = vextract.high.u32 %v399
        %v402 = vmul.u32 %v395, %v386
        %v403 = vadd.s32 %v398, %v400
        %vm404 = vc.u32 %v398, %v400
        %v405 = vadd.s32 %v401, 1
        %v406 = vsel %vm404, %v405, %v401
        %v407 = vadd.s32 %v402, %v406
        %v408 = vadd.s32 %v407, 536870912
        %v409 = vshrl.u32 %v408, 30
        %v410 = vshll.u32 %v409, 30
        %v411 = vsub.s32 %v407, %v410
        %vm412 = vcmp.lt.s32.totalorder %v411, 0
        %v413 = vsub.s32 0, %v411
        %v414 = vsel %vm412, %v413, %v411
        %v415 = vclz %v414
        %v416 = vsub.s32 %v415, 2
        %vm417 = vcmp.gt.s32.totalorder 0, %v416
        %v418 = vsel %vm417, 0, %v416
        %v419 = vsub.s32 32, %v418
        %v420 = vshll.u32 %v411, %v418
        %v421 = vshrl.u32 %v403, %v419
        %v422 = vor.u32 %v420, %v421
        %v423 = vsub.s32 4294967266, %v418
        %v424 = vadd.s32 %v423, 127
        %v425 = vshll.u32 %v424, 23
        %v426 = vor.u32 4788187, %v425
        %v427 = vand.u32 2147483647, %v426
        %v429 = vcvt.s32.f32 %v422
        %v430 = vmul.f32 %v429, %v427
        %v431 = vxor.u32 %v430, 2147483648
        %v432 = vsel %vm349, %v431, %v430
        %v433 = vsub.s32 4, %v409
        %v434 = vsel %vm349, %v433, %v409
        %v435 = vsel %vm348, %v340, %v432
        %v436 = vsel %vm348, 0, %v434
        %v437 = vcosq.f32.pop %v435
        %v438 = vsinq.f32.pop %v435
        %vm439 = vweird.f32 %v340
        %v440 = vadd.s32 %v436, 3
        %v441 = vand.u32 %v440, 3
        %vm442 = vcmp.lt.s32.totalorder %v441, 2
        %vm443 = vcmp.eq.s32.totalorder %v441, 0
        %v444 = vxor.u32 %v438, 2147483648
        %v445 = vsel %vm443, %v437, %v444
        %vm446 = vcmp.eq.s32.totalorder %v441, 2
        %v447 = vxor.u32 %v437, 2147483648
        %v448 = vsel %vm446, %v447, %v438
        %v449 = vsel %vm442, %v445, %v448
        %v450 = vsel %vm439, nan, %v449
        %v451 = vand.u32 2147483647, %v341
        %vm452 = vcmp.le.f32.partialorder %v451, 0.7853982
        %vm453 = vcmp.lt.s32.totalorder %v341, 0
        %v454 = vand.u32 %v341, 2139095040
        %v455 = vshrl.u32 %v454, 23
        %v456 = vsub.s32 %v455, 127
        %v457 = vand.u32 2147483647, %v341
        %v458 = vand.u32 %v457, 8388607
        %v459 = vor.u32 %v458, 8388608
        %v460 = vsub.s32 0, %v459
        %v461 = vadd.s32 %v456, 1
        %vm462 = vcmp.gt.s32.totalorder %v461, 0
        %v463 = vsel %vm462, %v461, 0
        %v464 = vshrl.u32 %v463, 5
        %v465 = vand.u32 %v463, 31
        %v466 = vsub.s32 32, %v465
        %v467 = vshrl.u32 683565275, %v466
        %v468 = vshll.u32 683565275, %v465
        %v469 = vshrl.u32 2475754826, %v466
        %v470 = vor.u32 %v468, %v469
        %v471 = vshll.u32 2475754826, %v465
        %v472 = vshrl.u32 2131351028, %v466
        %v473 = vor.u32 %v471, %v472
        %v474 = vshll.u32 2131351028, %v465
        %v475 = vshrl.u32 2102212464, %v466
        %v476 = vor.u32 %v474, %v475
        %v477 = vshll.u32 2102212464, %v465
        %v478 = vshrl.u32 920167782, %v466
        %v479 = vor.u32 %v477, %v478
        %v480 = vshll.u32 920167782, %v465
        %v481 = vshrl.u32 1326507024, %v466
        %v482 = vor.u32 %v480, %v481
        %vm483 = vcmp.lt.s32.totalorder %v464, 1
        %vm484 = vcmp.lt.s32.totalorder %v464, 2
        %vm485 = vcmp.lt.s32.totalorder %v464, 3
        %vm486 = vcmp.lt.s32.totalorder %v464, 4
        %v487 = vsel %vm483, %v467, %v470
        %v488 = vsel %vm486, %v476, 2102212464
        %v489 = vsel %vm485, %v473, %v488
        %v490 = vsel %vm484, %v487, %v489
        %v491 = vsel %vm483, %v470, %v473
        %v492 = vsel %vm486, %v479, 920167782
        %v493 = vsel %vm485, %v476, %v492
        %v494 = vsel %vm484, %v491, %v493
        %v495 = vsel %vm483, %v473, %v476
        %v496 = vsel %vm486, %v482, 1326507024
        %v497 = vsel %vm485, %v479, %v496
        %v498 = vsel %vm484, %v495, %v497
        %v499 = vshll.u32 %v459, 8
        %v500 = vmul.u32.u64.compose %v499, %v498
        %v501 = vextract.low.u32 %v500
        %v502 = vextract.high.u32 %v500
        %v503 = vmul.u32.u64.compose %v499, %v494
        %v504 = vextract.low.u32 %v503
        %v505 = vextract.high.u32 %v503
        %v506 = vmul.u32 %v499, %v490
        %v507 = vadd.s32 %v502, %v504
        %vm508 = vc.u32 %v502, %v504
        %v509 = vadd.s32 %v505, 1
        %v510 = vsel %vm508, %v509, %v505
        %v511 = vadd.s32 %v506, %v510
        %v512 = vadd.s32 %v511, 536870912
        %v513 = vshrl.u32 %v512, 30
        %v514 = vshll.u32 %v513, 30
        %v515 = vsub.s32 %v511, %v514
        %vm516 = vcmp.lt.s32.totalorder %v515, 0
        %v517 = vsub.s32 0, %v515
        %v518 = vsel %vm516, %v517, %v515
        %v519 = vclz %v518
        %v520 = vsub.s32 %v519, 2
        %vm521 = vcmp.gt.s32.totalorder 0, %v520
        %v522 = vsel %vm521, 0, %v520
        %v523 = vsub.s32 32, %v522
        %v524 = vshll.u32 %v515, %v522
        %v525 = vshrl.u32 %v507, %v523
        %v526 = vor.u32 %v524, %v525
        %v527 = vsub.s32 4294967266, %v522
        %v528 = vadd.s32 %v527, 127
        %v529 = vshll.u32 %v528, 23
        %v530 = vor.u32 4788187, %v529
        %v531 = vand.u32 2147483647, %v530
        %v533 = vcvt.s32.f32 %v526
        %v534 = vmul.f32 %v533, %v531
        %v535 = vxor.u32 %v534, 2147483648
        %v536 = vsel %vm453, %v535, %v534
        %v537 = vsub.s32 4, %v513
        %v538 = vsel %vm453, %v537, %v513
        %v539 = vsel %vm452, %v341, %v536
        %v540 = vsel %vm452, 0, %v538
        %v541 = vcosq.f32.pop %v539
        %v542 = vsinq.f32.pop %v539
        %vm543 = vweird.f32 %v341
        %v544 = vadd.s32 %v540, 3
        %v545 = vand.u32 %v544, 3
        %vm546 = vcmp.lt.s32.totalorder %v545, 2
        %vm547 = vcmp.eq.s32.totalorder %v545, 0
        %v548 = vxor.u32 %v542, 2147483648
        %v549 = vsel %vm547, %v541, %v548
        %vm550 = vcmp.eq.s32.totalorder %v545, 2
        %v551 = vxor.u32 %v541, 2147483648
        %v552 = vsel %vm550, %v551, %v542
        %v553 = vsel %vm546, %v549, %v552
        %v554 = vsel %vm543, nan, %v553
        %v555 = vand.u32 2147483647, %v342
        %vm556 = vcmp.le.f32.partialorder %v555, 0.7853982
        %vm557 = vcmp.lt.s32.totalorder %v342, 0
        %v558 = vand.u32 %v342, 2139095040
        %v559 = vshrl.u32 %v558, 23
        %v560 = vsub.s32 %v559, 127
        %v561 = vand.u32 2147483647, %v342
        %v562 = vand.u32 %v561, 8388607
        %v563 = vor.u32 %v562, 8388608
        %v564 = vsub.s32 0, %v563
        %v565 = vadd.s32 %v560, 1
        %vm566 = vcmp.gt.s32.totalorder %v565, 0
        %v567 = vsel %vm566, %v565, 0
        %v568 = vshrl.u32 %v567, 5
        %v569 = vand.u32 %v567, 31
        %v570 = vsub.s32 32, %v569
        %v571 = vshrl.u32 683565275, %v570
        %v572 = vshll.u32 683565275, %v569
        %v573 = vshrl.u32 2475754826, %v570
        %v574 = vor.u32 %v572, %v573
        %v575 = vshll.u32 2475754826, %v569
        %v576 = vshrl.u32 2131351028, %v570
        %v577 = vor.u32 %v575, %v576
        %v578 = vshll.u32 2131351028, %v569
        %v579 = vshrl.u32 2102212464, %v570
        %v580 = vor.u32 %v578, %v579
        %v581 = vshll.u32 2102212464, %v569
        %v582 = vshrl.u32 920167782, %v570
        %v583 = vor.u32 %v581, %v582
        %v584 = vshll.u32 920167782, %v569
        %v585 = vshrl.u32 1326507024, %v570
        %v586 = vor.u32 %v584, %v585
        %vm587 = vcmp.lt.s32.totalorder %v568, 1
        %vm588 = vcmp.lt.s32.totalorder %v568, 2
        %vm589 = vcmp.lt.s32.totalorder %v568, 3
        %vm590 = vcmp.lt.s32.totalorder %v568, 4
        %v591 = vsel %vm587, %v571, %v574
        %v592 = vsel %vm590, %v580, 2102212464
        %v593 = vsel %vm589, %v577, %v592
        %v594 = vsel %vm588, %v591, %v593
        %v595 = vsel %vm587, %v574, %v577
        %v596 = vsel %vm590, %v583, 920167782
        %v597 = vsel %vm589, %v580, %v596
        %v598 = vsel %vm588, %v595, %v597
        %v599 = vsel %vm587, %v577, %v580
        %v600 = vsel %vm590, %v586, 1326507024
        %v601 = vsel %vm589, %v583, %v600
        %v602 = vsel %vm588, %v599, %v601
        %v603 = vshll.u32 %v563, 8
        %v604 = vmul.u32.u64.compose %v603, %v602
        %v605 = vextract.low.u32 %v604
        %v606 = vextract.high.u32 %v604
        %v607 = vmul.u32.u64.compose %v603, %v598
        %v608 = vextract.low.u32 %v607
        %v609 = vextract.high.u32 %v607
        %v610 = vmul.u32 %v603, %v594
        %v611 = vadd.s32 %v606, %v608
        %vm612 = vc.u32 %v606, %v608
        %v613 = vadd.s32 %v609, 1
        %v614 = vsel %vm612, %v613, %v609
        %v615 = vadd.s32 %v610, %v614
        %v616 = vadd.s32 %v615, 536870912
        %v617 = vshrl.u32 %v616, 30
        %v618 = vshll.u32 %v617, 30
        %v619 = vsub.s32 %v615, %v618
        %vm620 = vcmp.lt.s32.totalorder %v619, 0
        %v621 = vsub.s32 0, %v619
        %v622 = vsel %vm620, %v621, %v619
        %v623 = vclz %v622
        %v624 = vsub.s32 %v623, 2
        %vm625 = vcmp.gt.s32.totalorder 0, %v624
        %v626 = vsel %vm625, 0, %v624
        %v627 = vsub.s32 32, %v626
        %v628 = vshll.u32 %v619, %v626
        %v629 = vshrl.u32 %v611, %v627
        %v630 = vor.u32 %v628, %v629
        %v631 = vsub.s32 4294967266, %v626
        %v632 = vadd.s32 %v631, 127
        %v633 = vshll.u32 %v632, 23
        %v634 = vor.u32 4788187, %v633
        %v635 = vand.u32 2147483647, %v634
        %v637 = vcvt.s32.f32 %v630
        %v638 = vmul.f32 %v637, %v635
        %v639 = vxor.u32 %v638, 2147483648
        %v640 = vsel %vm557, %v639, %v638
        %v641 = vsub.s32 4, %v617
        %v642 = vsel %vm557, %v641, %v617
        %v643 = vsel %vm556, %v342, %v640
        %v644 = vsel %vm556, 0, %v642
        %v645 = vcosq.f32.pop %v643
        %v646 = vsinq.f32.pop %v643
        %vm647 = vweird.f32 %v342
        %v648 = vadd.s32 %v644, 3
        %v649 = vand.u32 %v648, 3
        %vm650 = vcmp.lt.s32.totalorder %v649, 2
        %vm651 = vcmp.eq.s32.totalorder %v649, 0
        %v652 = vxor.u32 %v646, 2147483648
        %v653 = vsel %vm651, %v645, %v652
        %vm654 = vcmp.eq.s32.totalorder %v649, 2
        %v655 = vxor.u32 %v645, 2147483648
        %v656 = vsel %vm654, %v655, %v646
        %v657 = vsel %vm650, %v653, %v656
        %v658 = vsel %vm647, nan, %v657
        %v659 = vand.u32 2147483647, %v343
        %vm660 = vcmp.le.f32.partialorder %v659, 0.7853982
        %vm661 = vcmp.lt.s32.totalorder %v343, 0
        %v662 = vand.u32 %v343, 2139095040
        %v663 = vshrl.u32 %v662, 23
        %v664 = vsub.s32 %v663, 127
        %v665 = vand.u32 2147483647, %v343
        %v666 = vand.u32 %v665, 8388607
        %v667 = vor.u32 %v666, 8388608
        %v668 = vsub.s32 0, %v667
        %v669 = vadd.s32 %v664, 1
        %vm670 = vcmp.gt.s32.totalorder %v669, 0
        %v671 = vsel %vm670, %v669, 0
        %v672 = vshrl.u32 %v671, 5
        %v673 = vand.u32 %v671, 31
        %v674 = vsub.s32 32, %v673
        %v675 = vshrl.u32 683565275, %v674
        %v676 = vshll.u32 683565275, %v673
        %v677 = vshrl.u32 2475754826, %v674
        %v678 = vor.u32 %v676, %v677
        %v679 = vshll.u32 2475754826, %v673
        %v680 = vshrl.u32 2131351028, %v674
        %v681 = vor.u32 %v679, %v680
        %v682 = vshll.u32 2131351028, %v673
        %v683 = vshrl.u32 2102212464, %v674
        %v684 = vor.u32 %v682, %v683
        %v685 = vshll.u32 2102212464, %v673
        %v686 = vshrl.u32 920167782, %v674
        %v687 = vor.u32 %v685, %v686
        %v688 = vshll.u32 920167782, %v673
        %v689 = vshrl.u32 1326507024, %v674
        %v690 = vor.u32 %v688, %v689
        %vm691 = vcmp.lt.s32.totalorder %v672, 1
        %vm692 = vcmp.lt.s32.totalorder %v672, 2
        %vm693 = vcmp.lt.s32.totalorder %v672, 3
        %vm694 = vcmp.lt.s32.totalorder %v672, 4
        %v695 = vsel %vm691, %v675, %v678
        %v696 = vsel %vm694, %v684, 2102212464
        %v697 = vsel %vm693, %v681, %v696
        %v698 = vsel %vm692, %v695, %v697
        %v699 = vsel %vm691, %v678, %v681
        %v700 = vsel %vm694, %v687, 920167782
        %v701 = vsel %vm693, %v684, %v700
        %v702 = vsel %vm692, %v699, %v701
        %v703 = vsel %vm691, %v681, %v684
        %v704 = vsel %vm694, %v690, 1326507024
        %v705 = vsel %vm693, %v687, %v704
        %v706 = vsel %vm692, %v703, %v705
        %v707 = vshll.u32 %v667, 8
        %v708 = vmul.u32.u64.compose %v707, %v706
        %v709 = vextract.low.u32 %v708
        %v710 = vextract.high.u32 %v708
        %v711 = vmul.u32.u64.compose %v707, %v702
        %v712 = vextract.low.u32 %v711
        %v713 = vextract.high.u32 %v711
        %v714 = vmul.u32 %v707, %v698
        %v715 = vadd.s32 %v710, %v712
        %vm716 = vc.u32 %v710, %v712
        %v717 = vadd.s32 %v713, 1
        %v718 = vsel %vm716, %v717, %v713
        %v719 = vadd.s32 %v714, %v718
        %v720 = vadd.s32 %v719, 536870912
        %v721 = vshrl.u32 %v720, 30
        %v722 = vshll.u32 %v721, 30
        %v723 = vsub.s32 %v719, %v722
        %vm724 = vcmp.lt.s32.totalorder %v723, 0
        %v725 = vsub.s32 0, %v723
        %v726 = vsel %vm724, %v725, %v723
        %v727 = vclz %v726
        %v728 = vsub.s32 %v727, 2
        %vm729 = vcmp.gt.s32.totalorder 0, %v728
        %v730 = vsel %vm729, 0, %v728
        %v731 = vsub.s32 32, %v730
        %v732 = vshll.u32 %v723, %v730
        %v733 = vshrl.u32 %v715, %v731
        %v734 = vor.u32 %v732, %v733
        %v735 = vsub.s32 4294967266, %v730
        %v736 = vadd.s32 %v735, 127
        %v737 = vshll.u32 %v736, 23
        %v738 = vor.u32 4788187, %v737
        %v739 = vand.u32 2147483647, %v738
        %v741 = vcvt.s32.f32 %v734
        %v742 = vmul.f32 %v741, %v739
        %v743 = vxor.u32 %v742, 2147483648
        %v744 = vsel %vm661, %v743, %v742
        %v745 = vsub.s32 4, %v721
        %v746 = vsel %vm661, %v745, %v721
        %v747 = vsel %vm660, %v343, %v744
        %v748 = vsel %vm660, 0, %v746
        %v749 = vcosq.f32.pop %v747
        %v750 = vsinq.f32.pop %v747
        %vm751 = vweird.f32 %v343
        %v752 = vadd.s32 %v748, 3
        %v753 = vand.u32 %v752, 3
        %vm754 = vcmp.lt.s32.totalorder %v753, 2
        %vm755 = vcmp.eq.s32.totalorder %v753, 0
        %v756 = vxor.u32 %v750, 2147483648
        %v757 = vsel %vm755, %v749, %v756
        %vm758 = vcmp.eq.s32.totalorder %v753, 2
        %v759 = vxor.u32 %v749, 2147483648
        %v760 = vsel %vm758, %v759, %v750
        %v761 = vsel %vm754, %v757, %v760
        %v762 = vsel %vm751, nan, %v761
        %v763 = vand.u32 2147483647, %v344
        %vm764 = vcmp.le.f32.partialorder %v763, 0.7853982
        %vm765 = vcmp.lt.s32.totalorder %v344, 0
        %v766 = vand.u32 %v344, 2139095040
        %v767 = vshrl.u32 %v766, 23
        %v768 = vsub.s32 %v767, 127
        %v769 = vand.u32 2147483647, %v344
        %v770 = vand.u32 %v769, 8388607
        %v771 = vor.u32 %v770, 8388608
        %v772 = vsub.s32 0, %v771
        %v773 = vadd.s32 %v768, 1
        %vm774 = vcmp.gt.s32.totalorder %v773, 0
        %v775 = vsel %vm774, %v773, 0
        %v776 = vshrl.u32 %v775, 5
        %v777 = vand.u32 %v775, 31
        %v778 = vsub.s32 32, %v777
        %v779 = vshrl.u32 683565275, %v778
        %v780 = vshll.u32 683565275, %v777
        %v781 = vshrl.u32 2475754826, %v778
        %v782 = vor.u32 %v780, %v781
        %v783 = vshll.u32 2475754826, %v777
        %v784 = vshrl.u32 2131351028, %v778
        %v785 = vor.u32 %v783, %v784
        %v786 = vshll.u32 2131351028, %v777
        %v787 = vshrl.u32 2102212464, %v778
        %v788 = vor.u32 %v786, %v787
        %v789 = vshll.u32 2102212464, %v777
        %v790 = vshrl.u32 920167782, %v778
        %v791 = vor.u32 %v789, %v790
        %v792 = vshll.u32 920167782, %v777
        %v793 = vshrl.u32 1326507024, %v778
        %v794 = vor.u32 %v792, %v793
        %vm795 = vcmp.lt.s32.totalorder %v776, 1
        %vm796 = vcmp.lt.s32.totalorder %v776, 2
        %vm797 = vcmp.lt.s32.totalorder %v776, 3
        %vm798 = vcmp.lt.s32.totalorder %v776, 4
        %v799 = vsel %vm795, %v779, %v782
        %v800 = vsel %vm798, %v788, 2102212464
        %v801 = vsel %vm797, %v785, %v800
        %v802 = vsel %vm796, %v799, %v801
        %v803 = vsel %vm795, %v782, %v785
        %v804 = vsel %vm798, %v791, 920167782
        %v805 = vsel %vm797, %v788, %v804
        %v806 = vsel %vm796, %v803, %v805
        %v807 = vsel %vm795, %v785, %v788
        %v808 = vsel %vm798, %v794, 1326507024
        %v809 = vsel %vm797, %v791, %v808
        %v810 = vsel %vm796, %v807, %v809
        %v811 = vshll.u32 %v771, 8
        %v812 = vmul.u32.u64.compose %v811, %v810
        %v813 = vextract.low.u32 %v812
        %v814 = vextract.high.u32 %v812
        %v815 = vmul.u32.u64.compose %v811, %v806
        %v816 = vextract.low.u32 %v815
        %v817 = vextract.high.u32 %v815
        %v818 = vmul.u32 %v811, %v802
        %v819 = vadd.s32 %v814, %v816
        %vm820 = vc.u32 %v814, %v816
        %v821 = vadd.s32 %v817, 1
        %v822 = vsel %vm820, %v821, %v817
        %v823 = vadd.s32 %v818, %v822
        %v824 = vadd.s32 %v823, 536870912
        %v825 = vshrl.u32 %v824, 30
        %v826 = vshll.u32 %v825, 30
        %v827 = vsub.s32 %v823, %v826
        %vm828 = vcmp.lt.s32.totalorder %v827, 0
        %v829 = vsub.s32 0, %v827
        %v830 = vsel %vm828, %v829, %v827
        %v831 = vclz %v830
        %v832 = vsub.s32 %v831, 2
        %vm833 = vcmp.gt.s32.totalorder 0, %v832
        %v834 = vsel %vm833, 0, %v832
        %v835 = vsub.s32 32, %v834
        %v836 = vshll.u32 %v827, %v834
        %v837 = vshrl.u32 %v819, %v835
        %v838 = vor.u32 %v836, %v837
        %v839 = vsub.s32 4294967266, %v834
        %v840 = vadd.s32 %v839, 127
        %v841 = vshll.u32 %v840, 23
        %v842 = vor.u32 4788187, %v841
        %v843 = vand.u32 2147483647, %v842
        %v845 = vcvt.s32.f32 %v838
        %v846 = vmul.f32 %v845, %v843
        %v847 = vxor.u32 %v846, 2147483648
        %v848 = vsel %vm765, %v847, %v846
        %v849 = vsub.s32 4, %v825
        %v850 = vsel %vm765, %v849, %v825
        %v851 = vsel %vm764, %v344, %v848
        %v852 = vsel %vm764, 0, %v850
        %v853 = vcosq.f32.pop %v851
        %v854 = vsinq.f32.pop %v851
        %vm855 = vweird.f32 %v344
        %v856 = vadd.s32 %v852, 3
        %v857 = vand.u32 %v856, 3
        %vm858 = vcmp.lt.s32.totalorder %v857, 2
        %vm859 = vcmp.eq.s32.totalorder %v857, 0
        %v860 = vxor.u32 %v854, 2147483648
        %v861 = vsel %vm859, %v853, %v860
        %vm862 = vcmp.eq.s32.totalorder %v857, 2
        %v863 = vxor.u32 %v853, 2147483648
        %v864 = vsel %vm862, %v863, %v854
        %v865 = vsel %vm858, %v861, %v864
        %v866 = vsel %vm855, nan, %v865
        %v867 = vand.u32 2147483647, %v345
        %vm868 = vcmp.le.f32.partialorder %v867, 0.7853982
        %vm869 = vcmp.lt.s32.totalorder %v345, 0
        %v870 = vand.u32 %v345, 2139095040
        %v871 = vshrl.u32 %v870, 23
        %v872 = vsub.s32 %v871, 127
        %v873 = vand.u32 2147483647, %v345
        %v874 = vand.u32 %v873, 8388607
        %v875 = vor.u32 %v874, 8388608
        %v876 = vsub.s32 0, %v875
        %v877 = vadd.s32 %v872, 1
        %vm878 = vcmp.gt.s32.totalorder %v877, 0
        %v879 = vsel %vm878, %v877, 0
        %v880 = vshrl.u32 %v879, 5
        %v881 = vand.u32 %v879, 31
        %v882 = vsub.s32 32, %v881
        %v883 = vshrl.u32 683565275, %v882
        %v884 = vshll.u32 683565275, %v881
        %v885 = vshrl.u32 2475754826, %v882
        %v886 = vor.u32 %v884, %v885
        %v887 = vshll.u32 2475754826, %v881
        %v888 = vshrl.u32 2131351028, %v882
        %v889 = vor.u32 %v887, %v888
        %v890 = vshll.u32 2131351028, %v881
        %v891 = vshrl.u32 2102212464, %v882
        %v892 = vor.u32 %v890, %v891
        %v893 = vshll.u32 2102212464, %v881
        %v894 = vshrl.u32 920167782, %v882
        %v895 = vor.u32 %v893, %v894
        %v896 = vshll.u32 920167782, %v881
        %v897 = vshrl.u32 1326507024, %v882
        %v898 = vor.u32 %v896, %v897
        %vm899 = vcmp.lt.s32.totalorder %v880, 1
        %vm900 = vcmp.lt.s32.totalorder %v880, 2
        %vm901 = vcmp.lt.s32.totalorder %v880, 3
        %vm902 = vcmp.lt.s32.totalorder %v880, 4
        %v903 = vsel %vm899, %v883, %v886
        %v904 = vsel %vm902, %v892, 2102212464
        %v905 = vsel %vm901, %v889, %v904
        %v906 = vsel %vm900, %v903, %v905
        %v907 = vsel %vm899, %v886, %v889
        %v908 = vsel %vm902, %v895, 920167782
        %v909 = vsel %vm901, %v892, %v908
        %v910 = vsel %vm900, %v907, %v909
        %v911 = vsel %vm899, %v889, %v892
        %v912 = vsel %vm902, %v898, 1326507024
        %v913 = vsel %vm901, %v895, %v912
        %v914 = vsel %vm900, %v911, %v913
        %v915 = vshll.u32 %v875, 8
        %v916 = vmul.u32.u64.compose %v915, %v914
        %v917 = vextract.low.u32 %v916
        %v918 = vextract.high.u32 %v916
        %v919 = vmul.u32.u64.compose %v915, %v910
        %v920 = vextract.low.u32 %v919
        %v921 = vextract.high.u32 %v919
        %v922 = vmul.u32 %v915, %v906
        %v923 = vadd.s32 %v918, %v920
        %vm924 = vc.u32 %v918, %v920
        %v925 = vadd.s32 %v921, 1
        %v926 = vsel %vm924, %v925, %v921
        %v927 = vadd.s32 %v922, %v926
        %v928 = vadd.s32 %v927, 536870912
        %v929 = vshrl.u32 %v928, 30
        %v930 = vshll.u32 %v929, 30
        %v931 = vsub.s32 %v927, %v930
        %vm932 = vcmp.lt.s32.totalorder %v931, 0
        %v933 = vsub.s32 0, %v931
        %v934 = vsel %vm932, %v933, %v931
        %v935 = vclz %v934
        %v936 = vsub.s32 %v935, 2
        %vm937 = vcmp.gt.s32.totalorder 0, %v936
        %v938 = vsel %vm937, 0, %v936
        %v939 = vsub.s32 32, %v938
        %v940 = vshll.u32 %v931, %v938
        %v941 = vshrl.u32 %v923, %v939
        %v942 = vor.u32 %v940, %v941
        %v943 = vsub.s32 4294967266, %v938
        %v944 = vadd.s32 %v943, 127
        %v945 = vshll.u32 %v944, 23
        %v946 = vor.u32 4788187, %v945
        %v947 = vand.u32 2147483647, %v946
        %v949 = vcvt.s32.f32 %v942
        %v950 = vmul.f32 %v949, %v947
        %v951 = vxor.u32 %v950, 2147483648
        %v952 = vsel %vm869, %v951, %v950
        %v953 = vsub.s32 4, %v929
        %v954 = vsel %vm869, %v953, %v929
        %v955 = vsel %vm868, %v345, %v952
        %v956 = vsel %vm868, 0, %v954
        %v957 = vcosq.f32.pop %v955
        %v958 = vsinq.f32.pop %v955
        %vm959 = vweird.f32 %v345
        %v960 = vadd.s32 %v956, 3
        %v961 = vand.u32 %v960, 3
        %vm962 = vcmp.lt.s32.totalorder %v961, 2
        %vm963 = vcmp.eq.s32.totalorder %v961, 0
        %v964 = vxor.u32 %v958, 2147483648
        %v965 = vsel %vm963, %v957, %v964
        %vm966 = vcmp.eq.s32.totalorder %v961, 2
        %v967 = vxor.u32 %v957, 2147483648
        %v968 = vsel %vm966, %v967, %v958
        %v969 = vsel %vm962, %v965, %v968
        %v970 = vsel %vm959, nan, %v969
        %v971 = vand.u32 2147483647, %v346
        %vm972 = vcmp.le.f32.partialorder %v971, 0.7853982
        %vm973 = vcmp.lt.s32.totalorder %v346, 0
        %v974 = vand.u32 %v346, 2139095040
        %v975 = vshrl.u32 %v974, 23
        %v976 = vsub.s32 %v975, 127
        %v977 = vand.u32 2147483647, %v346
        %v978 = vand.u32 %v977, 8388607
        %v979 = vor.u32 %v978, 8388608
        %v980 = vsub.s32 0, %v979
        %v981 = vadd.s32 %v976, 1
        %vm982 = vcmp.gt.s32.totalorder %v981, 0
        %v983 = vsel %vm982, %v981, 0
        %v984 = vshrl.u32 %v983, 5
        %v985 = vand.u32 %v983, 31
        %v986 = vsub.s32 32, %v985
        %v987 = vshrl.u32 683565275, %v986
        %v988 = vshll.u32 683565275, %v985
        %v989 = vshrl.u32 2475754826, %v986
        %v990 = vor.u32 %v988, %v989
        %v991 = vshll.u32 2475754826, %v985
        %v992 = vshrl.u32 2131351028, %v986
        %v993 = vor.u32 %v991, %v992
        %v994 = vshll.u32 2131351028, %v985
        %v995 = vshrl.u32 2102212464, %v986
        %v996 = vor.u32 %v994, %v995
        %v997 = vshll.u32 2102212464, %v985
        %v998 = vshrl.u32 920167782, %v986
        %v999 = vor.u32 %v997, %v998
        %v1000 = vshll.u32 920167782, %v985
        %v1001 = vshrl.u32 1326507024, %v986
        %v1002 = vor.u32 %v1000, %v1001
        %vm1003 = vcmp.lt.s32.totalorder %v984, 1
        %vm1004 = vcmp.lt.s32.totalorder %v984, 2
        %vm1005 = vcmp.lt.s32.totalorder %v984, 3
        %vm1006 = vcmp.lt.s32.totalorder %v984, 4
        %v1007 = vsel %vm1003, %v987, %v990
        %v1008 = vsel %vm1006, %v996, 2102212464
        %v1009 = vsel %vm1005, %v993, %v1008
        %v1010 = vsel %vm1004, %v1007, %v1009
        %v1011 = vsel %vm1003, %v990, %v993
        %v1012 = vsel %vm1006, %v999, 920167782
        %v1013 = vsel %vm1005, %v996, %v1012
        %v1014 = vsel %vm1004, %v1011, %v1013
        %v1015 = vsel %vm1003, %v993, %v996
        %v1016 = vsel %vm1006, %v1002, 1326507024
        %v1017 = vsel %vm1005, %v999, %v1016
        %v1018 = vsel %vm1004, %v1015, %v1017
        %v1019 = vshll.u32 %v979, 8
        %v1020 = vmul.u32.u64.compose %v1019, %v1018
        %v1021 = vextract.low.u32 %v1020
        %v1022 = vextract.high.u32 %v1020
        %v1023 = vmul.u32.u64.compose %v1019, %v1014
        %v1024 = vextract.low.u32 %v1023
        %v1025 = vextract.high.u32 %v1023
        %v1026 = vmul.u32 %v1019, %v1010
        %v1027 = vadd.s32 %v1022, %v1024
        %vm1028 = vc.u32 %v1022, %v1024
        %v1029 = vadd.s32 %v1025, 1
        %v1030 = vsel %vm1028, %v1029, %v1025
        %v1031 = vadd.s32 %v1026, %v1030
        %v1032 = vadd.s32 %v1031, 536870912
        %v1033 = vshrl.u32 %v1032, 30
        %v1034 = vshll.u32 %v1033, 30
        %v1035 = vsub.s32 %v1031, %v1034
        %vm1036 = vcmp.lt.s32.totalorder %v1035, 0
        %v1037 = vsub.s32 0, %v1035
        %v1038 = vsel %vm1036, %v1037, %v1035
        %v1039 = vclz %v1038
        %v1040 = vsub.s32 %v1039, 2
        %vm1041 = vcmp.gt.s32.totalorder 0, %v1040
        %v1042 = vsel %vm1041, 0, %v1040
        %v1043 = vsub.s32 32, %v1042
        %v1044 = vshll.u32 %v1035, %v1042
        %v1045 = vshrl.u32 %v1027, %v1043
        %v1046 = vor.u32 %v1044, %v1045
        %v1047 = vsub.s32 4294967266, %v1042
        %v1048 = vadd.s32 %v1047, 127
        %v1049 = vshll.u32 %v1048, 23
        %v1050 = vor.u32 4788187, %v1049
        %v1051 = vand.u32 2147483647, %v1050
        %v1053 = vcvt.s32.f32 %v1046
        %v1054 = vmul.f32 %v1053, %v1051
        %v1055 = vxor.u32 %v1054, 2147483648
        %v1056 = vsel %vm973, %v1055, %v1054
        %v1057 = vsub.s32 4, %v1033
        %v1058 = vsel %vm973, %v1057, %v1033
        %v1059 = vsel %vm972, %v346, %v1056
        %v1060 = vsel %vm972, 0, %v1058
        %v1061 = vcosq.f32.pop %v1059
        %v1062 = vsinq.f32.pop %v1059
        %vm1063 = vweird.f32 %v346
        %v1064 = vadd.s32 %v1060, 3
        %v1065 = vand.u32 %v1064, 3
        %vm1066 = vcmp.lt.s32.totalorder %v1065, 2
        %vm1067 = vcmp.eq.s32.totalorder %v1065, 0
        %v1068 = vxor.u32 %v1062, 2147483648
        %v1069 = vsel %vm1067, %v1061, %v1068
        %vm1070 = vcmp.eq.s32.totalorder %v1065, 2
        %v1071 = vxor.u32 %v1061, 2147483648
        %v1072 = vsel %vm1070, %v1071, %v1062
        %v1073 = vsel %vm1066, %v1069, %v1072
        %v1074 = vsel %vm1063, nan, %v1073
        %1075 = vst [vmem:[%s176] sm:$0xff] %v450
        %1076 = vst [vmem:[%s176 + $0x8] sm:$0xff] %v554
        %1077 = vst [vmem:[%s176 + $0x10] sm:$0xff] %v658
        %1078 = vst [vmem:[%s176 + $0x18] sm:$0xff] %v762
        %1079 = vst [vmem:[%s176 + $0x20] sm:$0xff] %v866
        %1080 = vst [vmem:[%s176 + $0x28] sm:$0xff] %v970
        %1081 = vst [vmem:[%s176 + $0x30] sm:$0xff] %v1074
        %s1082 = sand.u32 %s93, 1
        %s1083 = scalar_lea.sflag [#allocation3], %s1082
        %s1084 = sand.u32 %s93, 1
        %s1085 = smul.addr %s1084, 56
        %s1086 = scalar_lea.vmem [#allocation2], %s1085
        // Predicated region
        $region33: #{tpu_custom_call.1} parent=31 // pred_check
          %p1087 = pneg %p103
        $region34: #{tpu_custom_call.1} parent=31 // pred_check_branch
          %1089 = sbr.rel (%p1087) target = $region36
        $region35: #{tpu_custom_call.1} parent=31 // pred_region
          %s1090 = smul.u32 7, %s17
          %s1091 = ssub.s32 25, %s1090
          %p1092 = scmp.lt.s32.totalorder %s1091, 7
          %s1093 = scalar_select %p1092, %s1091, 7
          %s1094 = smul.u32 128, %s1093
          %s1096 = ssub.s32 896, %s1094
          %1097 = vsyncadd %s1083, %s1096
          %p1098 = scmp.ne.s32.totalorder 0, %s1094
          %s1099 = smul.addr %s1090, 128
          %s1100 = scalar_lea.hbm %s3, %s1099
          %s1101 = smul.u32 8, %s1093
          %s1102 = sshll.u32 %s1086, 4
          %s1103 = int_to_ptr.vmem [resolvable:$true] %s1102
          %s1104 = sshll.u32 %s1101, 4
          %1108 = dma.vmem_to_hbm [thread:$0]  (%p1098), %s1103, %s1104, %s1100, %s1083, 128, 128, 8
        $region36: #{tpu_custom_call.1} parent=31 // pred_fallthru
          _
      $region32: #{tpu_custom_call.1} parent=5 // pred_fallthru
        _
      %p1109 = scmp.le.s32.totalorder 2, %s12
      // Predicated region
      $region37: #{tpu_custom_call.1} parent=5 // pred_check
        %p1110 = pneg %p1109
      $region38: #{tpu_custom_call.1} parent=5 // pred_check_branch
        %1112 = sbr.rel (%p1110) target = $region40
      $region39: #{tpu_custom_call.1} parent=5 // pred_region
        %s1113 = ssub.s32 %s12, 2
        // Predicated region
        $region41: #{tpu_custom_call.1} parent=39 // pred_check
          %p1114 = pneg %p109
        $region42: #{tpu_custom_call.1} parent=39 // pred_check_branch
          %1116 = sbr.rel (%p1114) target = $region44
        $region43: #{tpu_custom_call.1} parent=39 // pred_region
          %s1117 = sand.u32 %s94, 1
          %s1118 = scalar_lea.sflag [#allocation3], %s1117
          %s1119 = sand.u32 %s94, 1
          %s1120 = smul.addr %s1119, 56
          %s1121 = scalar_lea.vmem [#allocation2], %s1120
          %1122 = dma.done %s1118, 896
        $region44: #{tpu_custom_call.1} parent=39 // pred_fallthru
          _
      $region40: #{tpu_custom_call.1} parent=5 // pred_fallthru
        _
    $region6: #{tpu_custom_call.1} parent=1 // loop_footer
      %s16 = sadd.s32 1, %s12
    $region7: #{tpu_custom_call.1} parent=1 // loop_footer_branch
      %11 = sbr.rel target = $region3
    $region8: #{tpu_custom_call.1} parent=1 // loop_exit
      _
    %1123 = vsyncpa [#allocation3], 1
    %s1124 = scalar_lea.sflag [#allocation3], 1
    %1125 = vsyncpa %s1124, 1

</llo_original>
